<compile_context>
chip_gen: v6e
topology: v6e:2x2x1
jax: 0.10.0
libtpu: 0.0.40
codegen_flags: <defaults>
</compile_context>

<pallas_src>
import jax
import jax.numpy as jnp
from jax.experimental import pallas as pl
from jax.experimental.pallas import tpu as pltpu


def _residual_add_kernel(net_ref, res_ref, out_ref):
    # net_ref / res_ref / out_ref : (bb, C, tl) tiles in VMEM.
    out_ref[...] = net_ref[...] + res_ref[...]


def residual_add(x_net, x_res, *, target_block_bytes=2 << 20):
    """Delay-aligned residual sum: out = x_net + x_res, shapes (B, C, L)."""
    assert x_net.shape == x_res.shape, "branches must be delay-aligned"
    B, C, L = x_net.shape
    itemsize = jnp.dtype(x_res.dtype).itemsize

    # Lane (last-dim) block: full L when small (always legal), else a multiple
    # of 128 so stores stay unmasked / lane-dense; ragged tail blocks are
    # handled by the Pallas pipeline.
    tl = L if L <= 1024 else 1024

    # Group batch elements so each grid step moves >= ~target_block_bytes per
    # operand (amortizes the fixed per-step pipeline overhead).
    per_batch_bytes = max(C * tl * itemsize, 1)
    bb = max(1, min(B, target_block_bytes // per_batch_bytes))

    grid = (pl.cdiv(B, bb), pl.cdiv(L, tl))
    spec = pl.BlockSpec((bb, C, tl), lambda i, j: (i, 0, j))

    return pl.pallas_call(
        _residual_add_kernel,
        out_shape=jax.ShapeDtypeStruct(x_res.shape, x_res.dtype),
        grid_spec=pltpu.PrefetchScalarGridSpec(
            num_scalar_prefetch=0,
            grid=grid,
            in_specs=[spec, spec],
            out_specs=spec,
        ),
        compiler_params=pltpu.CompilerParams(
            dimension_semantics=("parallel", "parallel")),
    )(x_net, x_res)


def residual_forward(x, module_fn):
    """Residual.forward(x) = module(x) + x (offline mode).

    `module_fn` stands in for the arbitrary wrapped nn.Module branch.
    """
    # TODO(synk): the wrapped `module` is an arbitrary user sub-network and the
    # cc.AlignBranches / CachedPadding1d delay compensation only matters in
    # streaming mode (it is the identity offline), so the branch is evaluated
    # as a plain JAX callable and only the residual add is a Pallas kernel.
    x_net = module_fn(x).astype(x.dtype)
    return residual_add(x_net, x)


if __name__ == "__main__":
    # Small shapes consistent with the module's (B, C, L) Conv1d-style usage.
    B, C, L = 2, 16, 32

    key = jax.random.PRNGKey(0)
    kx, kw, kb = jax.random.split(key, 3)
    x = jax.random.normal(kx, (B, C, L), dtype=jnp.float32)

    # Representative wrapped branch for the demo (the kind of block raveish's
    # Residual typically wraps): LeakyReLU(0.2) -> same-padded Conv1d(C, C, 3).
    fan_in = C * 3
    bound = 1.0 / (fan_in ** 0.5)
    w = jax.random.uniform(kw, (C, C, 3), jnp.float32, -bound, bound)
    b = jax.random.uniform(kb, (C,), jnp.float32, -bound, bound)

    def branch(inp):
        xa = jnp.where(inp > 0, inp, 0.2 * inp)
        dn = jax.lax.conv_dimension_numbers(inp.shape, w.shape,
                                            ("NCH", "OIH", "NCH"))
        y = jax.lax.conv_general_dilated(xa, w, window_strides=(1,),
                                         padding=((1, 1),),
                                         dimension_numbers=dn)
        return y + b[None, :, None]

    out = residual_forward(x, branch)
    jax.block_until_ready(out)

    # Correctness check against a plain-JAX reference of the full forward.
    ref = branch(x) + x
    assert out.shape == (B, C, L)
    assert jnp.allclose(out, ref, atol=1e-6, rtol=1e-6)

    print("KERNEL_OK")
</pallas_src>

<mosaic_0001>
module attributes {stable_mosaic.version = 11 : i64} {
  func.func @_residual_add_kernel(%arg0: i32, %arg1: i32, %arg2: memref<2x16x32xf32, #tpu.memory_space<vmem>>, %arg3: memref<2x16x32xf32, #tpu.memory_space<vmem>>, %arg4: memref<2x16x32xf32, #tpu.memory_space<vmem>>) attributes {dimension_semantics = [#tpu.dimension_semantics<parallel>, #tpu.dimension_semantics<parallel>], iteration_bounds = array<i64: 1, 1>, scalar_prefetch = 0 : i64, scratch_operands = 0 : i64, tpu.core_type = #tpu.core_type<tc>, window_params = [{transform_indices = @transform_0, window_bounds = array<i64: 2, 16, 32>}, {transform_indices = @transform_1, window_bounds = array<i64: 2, 16, 32>}, {transform_indices = @transform_2, window_bounds = array<i64: 2, 16, 32>}]} {
    %c0 = arith.constant 0 : index
    %c0_0 = arith.constant 0 : index
    %c0_1 = arith.constant 0 : index
    %0 = vector.load %arg2[%c0, %c0_0, %c0_1] : memref<2x16x32xf32, #tpu.memory_space<vmem>>, vector<2x16x32xf32>
    %c0_2 = arith.constant 0 : index
    %c0_3 = arith.constant 0 : index
    %c0_4 = arith.constant 0 : index
    %1 = vector.load %arg3[%c0_2, %c0_3, %c0_4] : memref<2x16x32xf32, #tpu.memory_space<vmem>>, vector<2x16x32xf32>
    %2 = arith.addf %0, %1 : vector<2x16x32xf32>
    %c0_5 = arith.constant 0 : index
    %c0_6 = arith.constant 0 : index
    %c0_7 = arith.constant 0 : index
    %3 = vector.load %arg4[%c0_5, %c0_6, %c0_7] : memref<2x16x32xf32, #tpu.memory_space<vmem>>, vector<2x16x32xf32>
    tpu.vector_store %arg4[%c0_5, %c0_6, %c0_7], %2 {strides = array<i32>} : memref<2x16x32xf32, #tpu.memory_space<vmem>>, vector<2x16x32xf32>,
    return
  }
  func.func @transform_0(%arg0: i32, %arg1: i32) -> (i32, i32, i32) {
    %c0_i32 = arith.constant 0 : i32
    %c0_i32_0 = arith.constant 0 : i32
    return %arg0, %c0_i32, %arg1 : i32, i32, i32
  }
  func.func @transform_1(%arg0: i32, %arg1: i32) -> (i32, i32, i32) {
    %c0_i32 = arith.constant 0 : i32
    %c0_i32_0 = arith.constant 0 : i32
    return %arg0, %c0_i32, %arg1 : i32, i32, i32
  }
  func.func @transform_2(%arg0: i32, %arg1: i32) -> (i32, i32, i32) {
    %c0_i32 = arith.constant 0 : i32
    %c0_i32_0 = arith.constant 0 : i32
    return %arg0, %c0_i32, %arg1 : i32, i32, i32
  }
}

</mosaic_0001>

<llo_original>
// kernel: tpu_custom_call.1
$region0: #{tpu_custom_call.1}
  #allocation0 [shape = 'u32[]', space=smem, size = 0x4, offset = 0x4, fixed_abs, tag = 'smem constant byte address 0x4 - core index']
  #allocation1 [shape = 'u32[144,128]{1,0:T(1,128)}', space=vmem, size = 0x12000, scoped, tag = 'internal scratch']
  %s0 = inlined_call_operand.hbm [shape: f32[2,16,32], index: 0, kind: input, shape index: {}]
  %s1 = inlined_call_operand.hbm [shape: f32[2,16,32], index: 1, kind: input, shape index: {}]
  %s2 = inlined_call_operand.hbm [shape: f32[2,16,32], index: 2, kind: output, shape index: {}]
  %s3 = sld [smem:[#allocation0]]
  $region26: #{tpu_custom_call.1} parent=0
    _
  %s5 = ssub.s32 1, %s3
  %s6 = scalar_select 0, %s5, %s3
  $region1: #{tpu_custom_call.1} parent=0
    #allocation2 [shape = 'u8[16384]{0}', space=vmem, size = 0x4000, scoped, tag = 'input window, operand 0, single buffered']
    #allocation3 [shape = 's32[1]{0}', space=sflag, size = 0x4, scoped, tag = 'scoped memory for tpu_custom_call.1']
    #allocation4 [shape = 's32[1]{0}', space=sflag, size = 0x4, scoped, tag = 'scoped memory for tpu_custom_call.1']
    #allocation5 [shape = 'u8[16384]{0}', space=vmem, size = 0x4000, scoped, tag = 'input window, operand 1, single buffered']
    #allocation6 [shape = 's32[1]{0}', space=sflag, size = 0x4, scoped, tag = 'scoped memory for tpu_custom_call.1']
    #allocation7 [shape = 'u8[16384]{0}', space=vmem, size = 0x4000, scoped, tag = 'output window, operand 0, single buffered']
    %7 = vsyncpa [#allocation3], 0
    %8 = vsyncpa [#allocation6], 0
    %9 = vsyncpa [#allocation4], 0
    // Predicated region
    $region2: #{tpu_custom_call.1} parent=1 // pred_check
      _
    $region3: #{tpu_custom_call.1} parent=1 // pred_check_branch
      %11 = sbr.rel (0) target = $region5
    $region4: #{tpu_custom_call.1} parent=1 // pred_region
      %s13 = ssub.s32 512, 512
      %14 = vsyncadd [#allocation3], %s13
      %s15 = sshll.u32 [#allocation2], 4
      %s16 = int_to_ptr.vmem [resolvable:$true] %s15
      %21 = dma.hbm_to_vmem [thread:$0]  %s0, 512, %s16, [#allocation3], 128, 128, 8
    $region5: #{tpu_custom_call.1} parent=1 // pred_fallthru
      _
    // Predicated region
    $region6: #{tpu_custom_call.1} parent=1 // pred_check
      _
    $region7: #{tpu_custom_call.1} parent=1 // pred_check_branch
      %23 = sbr.rel (0) target = $region9
    $region8: #{tpu_custom_call.1} parent=1 // pred_region
      %s25 = ssub.s32 512, 512
      %26 = vsyncadd [#allocation6], %s25
      %s27 = sshll.u32 [#allocation5], 4
      %s28 = int_to_ptr.vmem [resolvable:$true] %s27
      %33 = dma.hbm_to_vmem [thread:$0]  %s1, 512, %s28, [#allocation6], 128, 128, 8
    $region9: #{tpu_custom_call.1} parent=1 // pred_fallthru
      _
    // Predicated region
    $region10: #{tpu_custom_call.1} parent=1 // pred_check
      _
    $region11: #{tpu_custom_call.1} parent=1 // pred_check_branch
      %35 = sbr.rel (0) target = $region13
    $region12: #{tpu_custom_call.1} parent=1 // pred_region
      %36 = dma.done [#allocation3], 512
    $region13: #{tpu_custom_call.1} parent=1 // pred_fallthru
      _
    // Predicated region
    $region14: #{tpu_custom_call.1} parent=1 // pred_check
      _
    $region15: #{tpu_custom_call.1} parent=1 // pred_check_branch
      %38 = sbr.rel (0) target = $region17
    $region16: #{tpu_custom_call.1} parent=1 // pred_region
      %39 = dma.done [#allocation6], 512
    $region17: #{tpu_custom_call.1} parent=1 // pred_fallthru
      _
    %v40 = vld [vmem:[#allocation2] sm:$0xff]
    %v41 = vld [vmem:[#allocation2 + $0x8] sm:$0xff]
    %v42 = vld [vmem:[#allocation2 + $0x10] sm:$0xff]
    %v43 = vld [vmem:[#allocation2 + $0x18] sm:$0xff]
    %v44 = vld [vmem:[#allocation5] sm:$0xff]
    %v45 = vld [vmem:[#allocation5 + $0x8] sm:$0xff]
    %v46 = vld [vmem:[#allocation5 + $0x10] sm:$0xff]
    %v47 = vld [vmem:[#allocation5 + $0x18] sm:$0xff]
    %v48 = vadd.f32 %v40, %v44
    %v49 = vadd.f32 %v41, %v45
    %v50 = vadd.f32 %v42, %v46
    %v51 = vadd.f32 %v43, %v47
    %vm52 = vcmask 261120
    %53 = vst.msk [vmem:[#allocation7] sm:$0xff] %vm52, %v48
    %54 = vst.msk [vmem:[#allocation7 + $0x8] sm:$0xff] %vm52, %v49
    %55 = vst.msk [vmem:[#allocation7 + $0x10] sm:$0xff] %vm52, %v50
    %56 = vst.msk [vmem:[#allocation7 + $0x18] sm:$0xff] %vm52, %v51
    // Predicated region
    $region18: #{tpu_custom_call.1} parent=1 // pred_check
      _
    $region19: #{tpu_custom_call.1} parent=1 // pred_check_branch
      %58 = sbr.rel (0) target = $region21
    $region20: #{tpu_custom_call.1} parent=1 // pred_region
      %s60 = ssub.s32 512, 512
      %61 = vsyncadd [#allocation4], %s60
      %s62 = sshll.u32 [#allocation7], 4
      %s63 = int_to_ptr.vmem [resolvable:$true] %s62
      %68 = dma.vmem_to_hbm [thread:$0]  %s63, 512, %s2, [#allocation4], 128, 128, 8
    $region21: #{tpu_custom_call.1} parent=1 // pred_fallthru
      _
    // Predicated region
    $region22: #{tpu_custom_call.1} parent=1 // pred_check
      _
    $region23: #{tpu_custom_call.1} parent=1 // pred_check_branch
      %70 = sbr.rel (0) target = $region25
    $region24: #{tpu_custom_call.1} parent=1 // pred_region
      %71 = dma.done [#allocation4], 512
    $region25: #{tpu_custom_call.1} parent=1 // pred_fallthru
      _
    %72 = vsyncpa [#allocation3], 1
    %73 = vsyncpa [#allocation6], 1
    %74 = vsyncpa [#allocation4], 1

</llo_original>
